<compile_context>
chip_gen: v7x
topology: tpu7x:2x2x1
jax: 0.10.0
libtpu: 0.0.40
codegen_flags: <defaults>
</compile_context>

<pallas_src>
import functools

import jax
import jax.numpy as jnp
from jax import lax
from jax.experimental import pallas as pl
from jax.experimental.pallas import tpu as pltpu


def _round_down(x, m):
    return (x // m) * m


# --------------------------------------------------------------------------- #
# Kernels
# --------------------------------------------------------------------------- #
def _pool_rows_kernel(x_ref, out_ref, *, inv_hw):
    """Fast path. x_ref: (tr, hw) — whole spatial extent per block. out_ref: (tr, 2)."""
    x = x_ref[...]
    s = jnp.sum(x, axis=-1, keepdims=True, dtype=jnp.float32)   # (tr, 1), f32 accumulate
    m = jnp.max(x, axis=-1, keepdims=True)                      # (tr, 1), exact in input dtype
    out_ref[:, 0:1] = (s * inv_hw).astype(out_ref.dtype)
    out_ref[:, 1:2] = m.astype(out_ref.dtype)


def _pool_rows_reduce_kernel(x_ref, out_ref, sum_acc, max_acc, *,
                             hw, thw, inv_hw, needs_mask):
    """Fallback. x_ref: (tr, thw); spatial axis tiled as grid axis 1 (reduction)."""
    k = pl.program_id(1)
    nk = pl.num_programs(1)

    @pl.when(k == 0)
    def _init():
        sum_acc[...] = jnp.zeros_like(sum_acc)
        max_acc[...] = jnp.full_like(max_acc, -jnp.inf)

    x = x_ref[...]

    def accumulate(x_sum, x_max):
        sum_acc[...] += jnp.sum(x_sum, axis=-1, keepdims=True, dtype=jnp.float32)
        max_acc[...] = jnp.maximum(
            max_acc[...],
            jnp.max(x_max, axis=-1, keepdims=True).astype(jnp.float32))

    if needs_mask:
        is_last = k == nk - 1

        @pl.when(jnp.logical_not(is_last))
        def _steady():                      # mask-free steady state (most grid steps)
            accumulate(x, x)

        @pl.when(is_last)
        def _tail():                        # padded spatial tail: 0 for sum, -inf for max
            lane = lax.broadcasted_iota(jnp.int32, (1, thw), 1)
            valid = (k * thw + lane) < hw
            accumulate(jnp.where(valid, x, 0), jnp.where(valid, x, -jnp.inf))
    else:
        accumulate(x, x)

    @pl.when(k == nk - 1)
    def _finalize():
        out_ref[:, 0:1] = (sum_acc[...] * inv_hw).astype(out_ref.dtype)
        out_ref[:, 1:2] = max_acc[...].astype(out_ref.dtype)


# --------------------------------------------------------------------------- #
# Wrapper
# --------------------------------------------------------------------------- #
def adaptive_max_avg_pool(x, *, block_bytes=4 * 1024 * 1024):
    """x: (N, C, H, W) float -> (N, 2C): [:, :C] = mean over HxW, [:, C:] = max."""
    N, C, H, W = x.shape
    if not jnp.issubdtype(x.dtype, jnp.floating):
        raise ValueError("adaptive_max_avg_pool expects a floating-point input")
    hw = H * W
    R = N * C
    itemsize = jnp.dtype(x.dtype).itemsize
    inv_hw = 1.0 / hw

    # Row-flattened view: one row per (n, c); row blocks are contiguous in HBM.
    xf = x.reshape(R, hw)

    rows_fit = block_bytes // (hw * itemsize)   # full-hw rows within the block budget

    if rows_fit >= min(8, R):
        # ---------------- fast path: whole spatial extent per block ----------------
        if R >= 8:
            tr = max(8, min(_round_down(rows_fit, 8), _round_down(R, 8)))
            if R >= 16:
                # Keep >= 2 parallel grid blocks so both v7x TensorCores get work.
                tr = min(tr, max(8, _round_down(R // 2, 8)))
        else:
            tr = R                              # < 8 rows: block equals the full extent
        grid = (pl.cdiv(R, tr),)
        kernel = functools.partial(_pool_rows_kernel, inv_hw=inv_hw)
        in_specs = [pl.BlockSpec((tr, hw), lambda r: (r, 0))]
        out_specs = pl.BlockSpec((tr, 2), lambda r: (r, 0))
        scratch_shapes = []
        dim_sem = ("parallel",)
        in_block_bytes = tr * hw * itemsize
    else:
        # ------- fallback: hw too large for 8 full rows; tile the spatial axis -------
        tr = R if R < 8 else 8
        thw = max(128, min(_round_down(block_bytes // (tr * itemsize), 128),
                           _round_down(hw, 128)))
        if thw >= hw:
            thw = hw
        needs_mask = (hw % thw) != 0
        grid = (pl.cdiv(R, tr), pl.cdiv(hw, thw))
        kernel = functools.partial(_pool_rows_reduce_kernel, hw=hw, thw=thw,
                                   inv_hw=inv_hw, needs_mask=needs_mask)
        in_specs = [pl.BlockSpec((tr, thw), lambda r, k: (r, k))]
        out_specs = pl.BlockSpec((tr, 2), lambda r, k: (r, 0))
        scratch_shapes = [pltpu.VMEM((tr, 1), jnp.float32),   # running sum
                          pltpu.VMEM((tr, 1), jnp.float32)]   # running max
        dim_sem = ("parallel", "arbitrary")
        in_block_bytes = tr * thw * itemsize

    # VMEM budget from the actual double-buffered working set (+ slack) rather than
    # a fixed constant — stays well inside v7x's 64 MiB / v5e's scoped default.
    vmem_limit = int(min(96 * 1024 * 1024,
                         max(8 * 1024 * 1024, 3 * in_block_bytes + (2 << 20))))

    out_flat = pl.pallas_call(
        kernel,
        out_shape=jax.ShapeDtypeStruct((R, 2), x.dtype),
        grid=grid,
        in_specs=in_specs,
        out_specs=out_specs,
        scratch_shapes=scratch_shapes,
        compiler_params=pltpu.CompilerParams(
            dimension_semantics=dim_sem,
            vmem_limit_bytes=vmem_limit,
        ),
    )(xf)

    # torch.cat((avg, max), dim=1).view(N, -1): first C cols = mean, last C = max.
    # Only a tiny (N, 2C) rearrangement happens outside the kernel.
    avg = out_flat[:, 0].reshape(N, C)
    mx = out_flat[:, 1].reshape(N, C)
    return jnp.concatenate([avg, mx], axis=1)


def _reference(x):
    return jnp.concatenate([jnp.mean(x, axis=(2, 3)), jnp.max(x, axis=(2, 3))], axis=1)


if __name__ == "__main__":
    key = jax.random.PRNGKey(0)

    # Primary check: shapes implied by the module (fast path, whole hw per block).
    N, C, H, W = 2, 4, 16, 16
    x = jax.random.normal(key, (N, C, H, W), dtype=jnp.float32)
    out = jax.block_until_ready(adaptive_max_avg_pool(x))
    ref = _reference(x)
    assert out.shape == (N, 2 * C), out.shape
    assert jnp.allclose(out, ref, atol=1e-5, rtol=1e-5), "mismatch (fast path)"

    # Multi-block fast path: non-128-aligned hw, several parallel row blocks.
    x3 = jax.random.normal(jax.random.PRNGKey(2), (4, 96, 9, 9), dtype=jnp.float32)
    out3 = jax.block_until_ready(adaptive_max_avg_pool(x3))
    assert out3.shape == (4, 192), out3.shape
    assert jnp.allclose(out3, _reference(x3), atol=1e-5, rtol=1e-5), "mismatch (multi-block)"

    # Fallback path: tiny budget forces spatial tiling + masked tail + ragged rows.
    x2 = jax.random.normal(jax.random.PRNGKey(1), (3, 4, 10, 13), dtype=jnp.float32)  # hw=130
    out2 = jax.block_until_ready(adaptive_max_avg_pool(x2, block_bytes=2048))
    assert out2.shape == (3, 8), out2.shape
    assert jnp.allclose(out2, _reference(x2), atol=1e-5, rtol=1e-5), "mismatch (reduction path)"

    print("KERNEL_OK")
</pallas_src>

<mosaic_0001>
module attributes {stable_mosaic.version = 11 : i64} {
  func.func @_pool_rows_kernel(%arg0: i32, %arg1: memref<8x256xf32, #tpu.memory_space<vmem>>, %arg2: memref<8x2xf32, #tpu.memory_space<vmem>>) attributes {dimension_semantics = [#tpu.dimension_semantics<parallel>], iteration_bounds = array<i64: 1>, scalar_prefetch = 0 : i64, scratch_operands = 0 : i64, tpu.core_type = #tpu.core_type<tc>, window_params = [{transform_indices = @transform_0, window_bounds = array<i64: 8, 256>}, {transform_indices = @transform_1, window_bounds = array<i64: 8, 2>}]} {
    %c0 = arith.constant 0 : index
    %c0_0 = arith.constant 0 : index
    %0 = vector.load %arg1[%c0, %c0_0] : memref<8x256xf32, #tpu.memory_space<vmem>>, vector<8x256xf32>
    %cst = arith.constant dense<0.000000e+00> : vector<8xf32>
    %1 = vector.multi_reduction <add>, %0, %cst [1] : vector<8x256xf32> to vector<8xf32>
    %2 = vector.shape_cast %1 : vector<8xf32> to vector<8x1xf32>
    %cst_1 = arith.constant dense<0xFF800000> : vector<8xf32>
    %3 = vector.multi_reduction <maximumf>, %0, %cst_1 [1] : vector<8x256xf32> to vector<8xf32>
    %4 = vector.shape_cast %3 : vector<8xf32> to vector<8x1xf32>
    %cst_2 = arith.constant 3.906250e-03 : f32
    %5 = vector.broadcast %cst_2 : f32 to vector<8x1xf32>
    %6 = arith.mulf %2, %5 : vector<8x1xf32>
    %c0_3 = arith.constant 0 : index
    %c0_4 = arith.constant 0 : index
    %7 = vector.load %arg2[%c0_3, %c0_4] : memref<8x2xf32, #tpu.memory_space<vmem>>, vector<8x1xf32>
    tpu.vector_store %arg2[%c0_3, %c0_4], %6 {strides = array<i32>} : memref<8x2xf32, #tpu.memory_space<vmem>>, vector<8x1xf32>,
    %c0_5 = arith.constant 0 : index
    %c1 = arith.constant 1 : index
    %8 = vector.load %arg2[%c0_5, %c1] : memref<8x2xf32, #tpu.memory_space<vmem>>, vector<8x1xf32>
    tpu.vector_store %arg2[%c0_5, %c1], %4 {strides = array<i32>} : memref<8x2xf32, #tpu.memory_space<vmem>>, vector<8x1xf32>,
    return
  }
  func.func @transform_0(%arg0: i32) -> (i32, i32) {
    %c0_i32 = arith.constant 0 : i32
    %c0_i32_0 = arith.constant 0 : i32
    return %arg0, %c0_i32 : i32, i32
  }
  func.func @transform_1(%arg0: i32) -> (i32, i32) {
    %c0_i32 = arith.constant 0 : i32
    %c0_i32_0 = arith.constant 0 : i32
    return %arg0, %c0_i32 : i32, i32
  }
}

</mosaic_0001>

<llo_original>
// kernel: tpu_custom_call.1
$region0: #{tpu_custom_call.1}
  #allocation0 [shape = 'u32[]', space=smem, size = 0x4, offset = 0x4, fixed_abs, tag = 'smem constant byte address 0x4 - core index']
  #allocation1 [shape = 'u32[144,128]{1,0:T(1,128)}', space=vmem, size = 0x12000, scoped, tag = 'internal scratch']
  %s0 = inlined_call_operand.hbm [shape: f32[8,256], index: 0, kind: input, shape index: {}]
  %s1 = inlined_call_operand.vmem [shape: f32[8,2], index: 1, kind: output, shape index: {}]
  %s2 = sld [smem:[#allocation0]]
  $region18: #{tpu_custom_call.1} parent=0
    _
  %s4 = ssub.s32 1, %s2
  %s5 = scalar_select 0, %s4, %s2
  $region1: #{tpu_custom_call.1} parent=0
    #allocation2 [shape = 'u8[8192]{0}', space=vmem, size = 0x2000, scoped, tag = 'input window, operand 0, single buffered']
    #allocation3 [shape = 's32[1]{0}', space=sflag, size = 0x4, scoped, tag = 'scoped memory for tpu_custom_call.1']
    %6 = vsyncpa [#allocation3], 0
    // Predicated region
    $region2: #{tpu_custom_call.1} parent=1 // pred_check
      _
    $region3: #{tpu_custom_call.1} parent=1 // pred_check_branch
      %8 = sbr.rel (0) target = $region5
    $region4: #{tpu_custom_call.1} parent=1 // pred_region
      %s10 = ssub.s32 256, 256
      %11 = vsyncadd [#allocation3], %s10
      %s13 = sshll.u32 [#allocation2], 4
      %s14 = int_to_ptr.vmem [resolvable:$true] %s13
      %16 = dma.hbm_to_vmem [thread:$0]  %s0, 256, %s14, [#allocation3]
    $region5: #{tpu_custom_call.1} parent=1 // pred_fallthru
      _
    // Predicated region
    $region6: #{tpu_custom_call.1} parent=1 // pred_check
      _
    $region7: #{tpu_custom_call.1} parent=1 // pred_check_branch
      %18 = sbr.rel (0) target = $region9
    $region8: #{tpu_custom_call.1} parent=1 // pred_region
      %19 = dma.done [#allocation3], 256
    $region9: #{tpu_custom_call.1} parent=1 // pred_fallthru
      _
    %v20 = vld [vmem:[#allocation2] sm:$0xff]
    %v21 = vld [vmem:[#allocation2 + $0x8] sm:$0xff]
    %v22 = vadd.f32 %v20, %v21
    %23 = vadd.xlane.f32.xlu0 %v22
    %v24 = vpop.xlane.xlu0 %23
    %v25 = vmax.f32 %v20, %v21
    %26 = vmax.xlane.f32.xlu0 %v25
    %v27 = vpop.xlane.xlu0 %26
    %v28 = vmul.f32 %v24, 0.00390625
    %vm29 = vcmask 7168
    %30 = vst.msk [vmem:[%s1] sm:$0xff] %vm29, %v28
    %vm31 = vcmask 15368
    %32 = vst.msk [vmem:[%s1] sm:$0xff] %vm31, %v27
    // Predicated region
    $region10: #{tpu_custom_call.1} parent=1 // pred_check
      _
    $region11: #{tpu_custom_call.1} parent=1 // pred_check_branch
      %34 = sbr.rel (0) target = $region13
    $region12: #{tpu_custom_call.1} parent=1 // pred_region
      _
    $region13: #{tpu_custom_call.1} parent=1 // pred_fallthru
      _
    // Predicated region
    $region14: #{tpu_custom_call.1} parent=1 // pred_check
      _
    $region15: #{tpu_custom_call.1} parent=1 // pred_check_branch
      %36 = sbr.rel (0) target = $region17
    $region16: #{tpu_custom_call.1} parent=1 // pred_region
      _
    $region17: #{tpu_custom_call.1} parent=1 // pred_fallthru
      _
    %37 = vsyncpa [#allocation3], 1

</llo_original>
